<compile_context>
chip_gen: v6e
topology: v6e:2x2x1
jax: 0.10.0
libtpu: 0.0.40
codegen_flags: <defaults>
</compile_context>

<pallas_src>
import functools
import math

import jax
import jax.numpy as jnp
import numpy as np
from jax.experimental import pallas as pl
from jax.experimental.pallas import tpu as pltpu

EPS = 1e-07
LANE = 128                      # TPU lane width (f32)
TK = 128                        # gathered memory rows per pipeline tile (lane-dense scratch)
NSLOTS = 4                      # gather pipeline depth (power of 2 → slot = t & (NSLOTS-1))
NFETCH = NSLOTS - 1             # prefetch distance (tiles in flight while computing)
UNROLL = 8                      # partial unroll of the DMA descriptor-issue loop
VMEM_LIMIT = 32 * 1024 * 1024   # explicit scoped-VMEM budget; fits v5e/v6e/v7x


def _round_up(x, m):
    return ((x + m - 1) // m) * m


# --------------------------------------------------------------------------------------
# Kernel 1: fused student+teacher Embed (linear + L2 normalize)
# --------------------------------------------------------------------------------------
def _embed_kernel(x_ref, w_ref, b_ref, o_ref):
    # Linear:  h = x @ W + b      (grid step 0 = student, grid step 1 = teacher)
    h = jnp.dot(x_ref[0], w_ref[0], preferred_element_type=jnp.float32) + b_ref[0]
    # Normalize(power=2): x / sqrt(sum(x^2)).  rsqrt goes to the EUP slot (free next to VPU).
    ssq = jnp.sum(h * h, axis=-1, keepdims=True)
    o_ref[0] = (h * jax.lax.rsqrt(ssq)).astype(o_ref.dtype)


def embed_pair(x, w, b):
    """x: (2, B, din_pad), w: (2, din_pad, d_pad), b: (2, 1, d_pad) -> (2, B, d_pad)."""
    _, B, din_pad = x.shape
    d_pad = w.shape[-1]
    return pl.pallas_call(
        _embed_kernel,
        out_shape=jax.ShapeDtypeStruct((2, B, d_pad), jnp.float32),
        grid=(2,),
        in_specs=[
            pl.BlockSpec((1, B, din_pad), lambda i: (i, 0, 0)),
            pl.BlockSpec((1, din_pad, d_pad), lambda i: (i, 0, 0)),
            pl.BlockSpec((1, 1, d_pad), lambda i: (i, 0, 0)),
        ],
        out_specs=pl.BlockSpec((1, B, d_pad), lambda i: (i, 0, 0)),
        compiler_params=pltpu.CompilerParams(
            dimension_semantics=("parallel",),   # student/teacher split across TCs on v7x
            vmem_limit_bytes=VMEM_LIMIT,
        ),
    )(x, w, b)


# --------------------------------------------------------------------------------------
# Kernel 2: gather-fused ContrastMemory scores + both ContrastLoss terms
# --------------------------------------------------------------------------------------
def _contrast_loss_kernel(
    idx_ref,                       # (B, k1_pad) int32, scalar-prefetched into SMEM
    vs_ref, vt_ref,                # (B, d_pad) f32 student / teacher embeddings (resident)
    mem_ref,                       # (n_data, 2*d_pad) f32 merged [v1 | v2] banks, HBM (pl.ANY)
    loss_ref,                      # (1, 1) f32 output (written once, at the last grid step)
    w_buf,                         # (NSLOTS, TK, 2*d_pad) VMEM gather buffers
    sem,                           # (NSLOTS,) DMA semaphores (one per slot)
    z_sc,                          # (2, 1) f32 running sums of exp(score/T) -> Z per stream
    exp1_sc, exp2_sc,              # (NT, B, TK) f32 per-element exp(score/T) streams
    *, T, n_data, B, K1, NT):
    b = pl.program_id(0)
    inv_T = 1.0 / T

    def start_fetch(tile, slot):
        # Gather TK merged rows (row indices read from SMEM) into VMEM slot.
        # ONE DMA per index (banks merged), partially unrolled so scalar index reads /
        # address math co-issue with the vector-misc descriptor slot.
        k0 = tile * TK

        def issue(j, carry):
            row = idx_ref[b, k0 + j]
            pltpu.make_async_copy(mem_ref.at[pl.ds(row, 1)],
                                  w_buf.at[slot, pl.ds(j, 1)],
                                  sem.at[slot]).start()
            return carry

        jax.lax.fori_loop(0, TK, issue, 0, unroll=UNROLL)

    def wait_fetch(slot):
        # ONE aggregated wait per slot: the descriptor below covers the full (TK, 2*d_pad)
        # slot buffer, whose byte count equals the sum of the TK row copies that were
        # signalled on sem[slot].
        pltpu.make_async_copy(mem_ref.at[pl.ds(0, TK)], w_buf.at[slot],
                              sem.at[slot]).wait()

    # Prime the gather pipeline for this batch row (up to NFETCH tiles in flight).
    for s in range(min(NFETCH, NT)):
        start_fetch(s, s)

    @pl.when(b == 0)
    def _():
        z_sc[...] = jnp.zeros_like(z_sc)

    vs = vs_ref[pl.ds(b, 1), :]                                # (1, d_pad)
    vt = vt_ref[pl.ds(b, 1), :]
    zrow = jnp.zeros_like(vs)
    # Block-diagonal LHS so both score streams come out of ONE MXU call per tile:
    #   lhs[0] = [vt | 0] -> row 0 of scores = vt . memory_v1 rows  (out_v2 stream)
    #   lhs[1] = [0 | vs] -> row 1 of scores = vs . memory_v2 rows  (out_v1 stream)
    lhs = jnp.concatenate(
        [jnp.concatenate([vt, zrow], axis=1),
         jnp.concatenate([zrow, vs], axis=1)], axis=0)         # (2, 2*d_pad), built once per b
    lane = jax.lax.broadcasted_iota(jnp.int32, (1, TK), 1)     # hoisted out of the loop

    @pl.loop(0, NT)
    def _(t):
        slot = t & (NSLOTS - 1)
        wait_fetch(slot)

        @pl.when(t + NFETCH < NT)
        def _():
            # Prefetch NFETCH tiles ahead; target slot is the one freed at iteration t-1.
            start_fetch(t + NFETCH, (t + NFETCH) & (NSLOTS - 1))

        w = w_buf[slot]                                        # (TK, 2*d_pad) merged rows
        s = jnp.einsum("md,kd->mk", lhs, w,
                       preferred_element_type=jnp.float32)     # (2, TK)
        e = jnp.exp(s * inv_T)
        valid = (t * TK + lane) < K1                           # mask out the K padding columns
        z_sc[...] += jnp.sum(jnp.where(valid, e, 0.0), axis=1, keepdims=True)
        exp2_sc[pl.ds(t, 1), pl.ds(b, 1), :] = e[0:1].reshape(1, 1, TK)   # vt.w1 -> out_v2
        exp1_sc[pl.ds(t, 1), pl.ds(b, 1), :] = e[1:2].reshape(1, 1, TK)   # vs.w2 -> out_v1

    # Finalize once all B*K1 scores are in scratch (grid runs b = 0..B-1 sequentially).
    @pl.when(b == B - 1)
    def _():
        m = K1 - 1
        Pn = 1.0 / n_data
        c = m * Pn + EPS
        log_m_pn = math.log(m * Pn)
        scale = n_data / float(B * K1)
        z2 = z_sc[0:1, :] * scale            # == mean(out_v2) * n_data (first-forward Z)
        z1 = z_sc[1:2, :] * scale            # == mean(out_v1) * n_data
        lane2 = jax.lax.broadcasted_iota(jnp.int32, (B, TK), 1)

        # loss = -( sum_pos log(o_pos) + B*m*log(m*Pn) - sum_all log(o + c) ) / B
        # (reduced-log form of ContrastLoss: one log per element + one per positive)
        def denom_body(t, carry):
            d1, d2 = carry
            valid = (t * TK + lane2) < K1
            d1 = d1 + jnp.sum(jnp.where(valid, jnp.log(exp1_sc[t] / z1 + c), 0.0),
                              keepdims=True)
            d2 = d2 + jnp.sum(jnp.where(valid, jnp.log(exp2_sc[t] / z2 + c), 0.0),
                              keepdims=True)
            return d1, d2

        zero = jnp.zeros((1, 1), jnp.float32)
        d1, d2 = jax.lax.fori_loop(0, NT, denom_body, (zero, zero))

        p1 = jnp.sum(jnp.log(exp1_sc[0, :, 0:1] / z1), keepdims=True)   # positives: k == 0
        p2 = jnp.sum(jnp.log(exp2_sc[0, :, 0:1] / z2), keepdims=True)

        neg_const = float(B * m) * log_m_pn
        loss1 = -(p1 + neg_const - d1) / B
        loss2 = -(p2 + neg_const - d2) / B
        loss_ref[...] = (loss1 + loss2).astype(jnp.float32)


def contrast_and_loss(e_s, e_t, idx_pad, mem_merged, *, T, n_data, K1):
    B, d_pad = e_s.shape
    two_d = mem_merged.shape[1]
    k1_pad = idx_pad.shape[1]
    assert k1_pad % TK == 0
    nt = k1_pad // TK
    kernel = functools.partial(_contrast_loss_kernel, T=float(T), n_data=float(n_data),
                               B=B, K1=K1, NT=nt)
    grid_spec = pltpu.PrefetchScalarGridSpec(
        num_scalar_prefetch=1,
        grid=(B,),
        in_specs=[
            pl.BlockSpec((B, d_pad), lambda b, idx: (0, 0)),   # student embeddings (resident)
            pl.BlockSpec((B, d_pad), lambda b, idx: (0, 0)),   # teacher embeddings (resident)
            pl.BlockSpec(memory_space=pl.ANY),                 # merged memory banks stay in HBM
        ],
        out_specs=pl.BlockSpec((1, 1), lambda b, idx: (0, 0)),
        scratch_shapes=[
            pltpu.VMEM((NSLOTS, TK, two_d), mem_merged.dtype), # gather pipeline buffers
            pltpu.SemaphoreType.DMA((NSLOTS,)),                # one DMA sem per slot
            pltpu.VMEM((2, 1), jnp.float32),                   # running sums -> Z per stream
            pltpu.VMEM((nt, B, TK), jnp.float32),              # exp(score/T), out_v1 stream
            pltpu.VMEM((nt, B, TK), jnp.float32),              # exp(score/T), out_v2 stream
        ],
    )
    out = pl.pallas_call(
        kernel,
        out_shape=jax.ShapeDtypeStruct((1, 1), jnp.float32),
        grid_spec=grid_spec,
        compiler_params=pltpu.CompilerParams(
            # Z and the score scratch are global across the batch, so this grid axis must be
            # sequential ("arbitrary"); megacore parallelism comes from the fused embed kernel.
            dimension_semantics=("arbitrary",),
            vmem_limit_bytes=VMEM_LIMIT,
        ),
    )(idx_pad, e_s, e_t, mem_merged)
    return out.reshape(1)   # matches torch: the loss has shape [1]


# --------------------------------------------------------------------------------------
# CRDLoss wrapper (parameter setup / padding = glue in plain JAX)
# --------------------------------------------------------------------------------------
class CRDLossPallas:
    def __init__(self, s_dim, t_dim, feat_dim, n_data, nce_k, nce_t, nce_m, key):
        self.s_dim, self.t_dim = s_dim, t_dim
        self.feat_dim = feat_dim
        self.n_data = n_data
        self.nce_k = nce_k
        self.nce_t = nce_t
        self.nce_m = nce_m   # unused: memory momentum update omitted (see TODO above)

        self.k1 = nce_k + 1
        self.k1_pad = _round_up(self.k1, TK)
        self.d_pad = _round_up(feat_dim, LANE)
        self.din_pad = _round_up(max(s_dim, t_dim), LANE)

        ks = jax.random.split(key, 6)
        # nn.Linear-style uniform init for the two Embed layers (deterministic).
        bound_s = 1.0 / math.sqrt(s_dim)
        bound_t = 1.0 / math.sqrt(t_dim)
        self.w_s = jax.random.uniform(ks[0], (s_dim, feat_dim), jnp.float32, -bound_s, bound_s)
        self.b_s = jax.random.uniform(ks[1], (feat_dim,), jnp.float32, -bound_s, bound_s)
        self.w_t = jax.random.uniform(ks[2], (t_dim, feat_dim), jnp.float32, -bound_t, bound_t)
        self.b_t = jax.random.uniform(ks[3], (feat_dim,), jnp.float32, -bound_t, bound_t)

        # ContrastMemory buffers: uniform(-stdv, stdv), stdv = 1/sqrt(feat_dim/3).
        stdv = 1.0 / math.sqrt(feat_dim / 3.0)
        self.mem_v1 = jax.random.uniform(ks[4], (n_data, feat_dim), jnp.float32, -stdv, stdv)
        self.mem_v2 = jax.random.uniform(ks[5], (n_data, feat_dim), jnp.float32, -stdv, stdv)
        # Merged + lane-padded [v1 | v2] banks: one row DMA per contrast index in the kernel.
        pad = self.d_pad - feat_dim
        self.memory_merged = jnp.concatenate(
            [jnp.pad(self.mem_v1, ((0, 0), (0, pad))),
             jnp.pad(self.mem_v2, ((0, 0), (0, pad)))], axis=1)          # (n_data, 2*d_pad)

        # Stacked + zero-padded Embed parameters so student & teacher share one fused kernel.
        # TODO(synk): when s_dim and t_dim differ a lot, padding both to max() wastes MXU
        #             K-depth on zeros; negligible next to kernel 2.
        w_stack = jnp.stack([
            jnp.pad(self.w_s, ((0, self.din_pad - s_dim), (0, pad))),
            jnp.pad(self.w_t, ((0, self.din_pad - t_dim), (0, pad))),
        ])
        b_stack = jnp.stack([
            jnp.pad(self.b_s, (0, pad)).reshape(1, self.d_pad),
            jnp.pad(self.b_t, (0, pad)).reshape(1, self.d_pad),
        ])
        self.w_stack = w_stack
        self.b_stack = b_stack

    def __call__(self, f_s, f_t, idx, contrast_idx):
        B = f_s.shape[0]
        # Fused student + teacher Embed (linear + L2 normalize): Pallas kernel 1.
        x = jnp.stack([jnp.pad(f_s, ((0, 0), (0, self.din_pad - self.s_dim))),
                       jnp.pad(f_t, ((0, 0), (0, self.din_pad - self.t_dim)))])
        emb = embed_pair(x, self.w_stack, self.b_stack)        # (2, B, d_pad)
        e_s, e_t = emb[0], emb[1]
        # Pad the contrast indices to a multiple of TK (pad columns gather row 0 and are
        # masked out of every reduction inside the kernel).  contrast_idx[:, 0] must be the
        # positive index, as in the standard CRD sampler.
        idx_pad = jnp.pad(contrast_idx.astype(jnp.int32),
                          ((0, 0), (0, self.k1_pad - self.k1)))
        # Gather-fused ContrastMemory scores + both ContrastLoss terms: Pallas kernel 2.
        return contrast_and_loss(e_s, e_t, idx_pad, self.memory_merged,
                                 T=self.nce_t, n_data=self.n_data, K1=self.k1)


# --------------------------------------------------------------------------------------
# Pure-JAX reference (mirrors the torch forward), used for a correctness check.
# --------------------------------------------------------------------------------------
def _reference(crd, f_s, f_t, contrast_idx):
    def emb(x, w, b):
        h = x @ w + b
        return h / jnp.sqrt(jnp.sum(h * h, axis=1, keepdims=True))

    e_s = emb(f_s, crd.w_s, crd.b_s)
    e_t = emb(f_t, crd.w_t, crd.b_t)
    B = f_s.shape[0]
    K1 = crd.nce_k + 1
    flat = contrast_idx.reshape(-1)
    w1 = crd.mem_v1[flat].reshape(B, K1, crd.feat_dim)
    w2 = crd.mem_v2[flat].reshape(B, K1, crd.feat_dim)
    out_v2 = jnp.exp(jnp.einsum("bkd,bd->bk", w1, e_t) / crd.nce_t)
    out_v1 = jnp.exp(jnp.einsum("bkd,bd->bk", w2, e_s) / crd.nce_t)
    o_s = out_v1 / (jnp.mean(out_v1) * crd.n_data)
    o_t = out_v2 / (jnp.mean(out_v2) * crd.n_data)

    def closs(o):
        m = K1 - 1
        Pn = 1.0 / crd.n_data
        pos = o[:, 0]
        neg = o[:, 1:]
        ld1 = jnp.log(pos / (pos + m * Pn + EPS))
        ld0 = jnp.log((m * Pn) / (neg + m * Pn + EPS))
        return -(jnp.sum(ld1) + jnp.sum(ld0)) / B

    return closs(o_s) + closs(o_t)


if __name__ == "__main__":
    # Small, deterministic configuration.
    B, s_dim, t_dim, feat_dim = 4, 64, 32, 32
    n_data, nce_k, nce_t, nce_m = 100, 8, 0.07, 0.5

    key = jax.random.PRNGKey(0)
    k_param, k_fs, k_ft, k_idx = jax.random.split(key, 4)

    crd = CRDLossPallas(s_dim, t_dim, feat_dim, n_data, nce_k, nce_t, nce_m, k_param)

    f_s = jax.random.normal(k_fs, (B, s_dim), jnp.float32)
    f_t = jax.random.normal(k_ft, (B, t_dim), jnp.float32)
    idx = jnp.arange(B, dtype=jnp.int32)                                    # positives
    contrast_idx = jax.random.randint(k_idx, (B, nce_k + 1), 0, n_data, dtype=jnp.int32)
    contrast_idx = contrast_idx.at[:, 0].set(idx)                           # col 0 = positive

    loss = crd(f_s, f_t, idx, contrast_idx)
    loss = jax.block_until_ready(loss)

    ref = _reference(crd, f_s, f_t, contrast_idx)
    if not np.allclose(np.asarray(loss)[0], np.asarray(ref), rtol=1e-4, atol=1e-5):
        raise AssertionError(f"mismatch: pallas={loss} ref={ref}")

    print("KERNEL_OK")
</pallas_src>

<mosaic_0001>
module attributes {stable_mosaic.version = 11 : i64} {
  func.func @_embed_kernel(%arg0: i32, %arg1: memref<1x4x128xf32, #tpu.memory_space<vmem>>, %arg2: memref<1x128x128xf32, #tpu.memory_space<vmem>>, %arg3: memref<1x1x128xf32, #tpu.memory_space<vmem>>, %arg4: memref<1x4x128xf32, #tpu.memory_space<vmem>>) attributes {dimension_semantics = [#tpu.dimension_semantics<parallel>], iteration_bounds = array<i64: 2>, scalar_prefetch = 0 : i64, scratch_operands = 0 : i64, tpu.core_type = #tpu.core_type<tc>, window_params = [{transform_indices = @transform_0, window_bounds = array<i64: 1, 4, 128>}, {transform_indices = @transform_1, window_bounds = array<i64: 1, 128, 128>}, {transform_indices = @transform_2, window_bounds = array<i64: 1, 1, 128>}, {transform_indices = @transform_3, window_bounds = array<i64: 1, 4, 128>}]} {
    %c0 = arith.constant 0 : index
    %c0_0 = arith.constant 0 : index
    %c0_1 = arith.constant 0 : index
    %0 = vector.load %arg1[%c0, %c0_0, %c0_1] : memref<1x4x128xf32, #tpu.memory_space<vmem>>, vector<1x4x128xf32>
    %1 = vector.shape_cast %0 : vector<1x4x128xf32> to vector<4x128xf32>
    %c0_2 = arith.constant 0 : index
    %c0_3 = arith.constant 0 : index
    %c0_4 = arith.constant 0 : index
    %2 = vector.load %arg2[%c0_2, %c0_3, %c0_4] : memref<1x128x128xf32, #tpu.memory_space<vmem>>, vector<1x128x128xf32>
    %3 = vector.shape_cast %2 : vector<1x128x128xf32> to vector<128x128xf32>
    %cst = arith.constant dense<0.000000e+00> : vector<4x128xf32>
    %4 = tpu.matmul %1, %3, %cst {dimension_numbers = #tpu.dot_dimension_numbers<[1], [0], [0], [1], [0, 0, 1, 1], [], []>} : vector<4x128xf32>, vector<128x128xf32>, vector<4x128xf32> -> vector<4x128xf32>
    %c0_5 = arith.constant 0 : index
    %c0_6 = arith.constant 0 : index
    %c0_7 = arith.constant 0 : index
    %5 = vector.load %arg3[%c0_5, %c0_6, %c0_7] : memref<1x1x128xf32, #tpu.memory_space<vmem>>, vector<1x1x128xf32>
    %6 = vector.shape_cast %5 : vector<1x1x128xf32> to vector<1x128xf32>
    %7 = vector.broadcast %6 : vector<1x128xf32> to vector<4x128xf32>
    %8 = arith.addf %4, %7 : vector<4x128xf32>
    %9 = arith.mulf %8, %8 : vector<4x128xf32>
    %cst_8 = arith.constant dense<0.000000e+00> : vector<4xf32>
    %10 = vector.multi_reduction <add>, %9, %cst_8 [1] : vector<4x128xf32> to vector<4xf32>
    %11 = vector.shape_cast %10 : vector<4xf32> to vector<4x1xf32>
    %12 = math.rsqrt %11 : vector<4x1xf32>
    %13 = vector.broadcast %12 : vector<4x1xf32> to vector<4x128xf32>
    %14 = arith.mulf %8, %13 : vector<4x128xf32>
    %c0_9 = arith.constant 0 : index
    %c0_10 = arith.constant 0 : index
    %c0_11 = arith.constant 0 : index
    %15 = vector.load %arg4[%c0_9, %c0_10, %c0_11] : memref<1x4x128xf32, #tpu.memory_space<vmem>>, vector<1x4x128xf32>
    %16 = vector.shape_cast %15 : vector<1x4x128xf32> to vector<4x128xf32>
    %17 = vector.shape_cast %14 : vector<4x128xf32> to vector<1x4x128xf32>
    tpu.vector_store %arg4[%c0_9, %c0_10, %c0_11], %17 {strides = array<i32>} : memref<1x4x128xf32, #tpu.memory_space<vmem>>, vector<1x4x128xf32>,
    return
  }
  func.func @transform_0(%arg0: i32) -> (i32, i32, i32) {
    %c0_i32 = arith.constant 0 : i32
    %c0_i32_0 = arith.constant 0 : i32
    %c0_i32_1 = arith.constant 0 : i32
    return %arg0, %c0_i32, %c0_i32_0 : i32, i32, i32
  }
  func.func @transform_1(%arg0: i32) -> (i32, i32, i32) {
    %c0_i32 = arith.constant 0 : i32
    %c0_i32_0 = arith.constant 0 : i32
    %c0_i32_1 = arith.constant 0 : i32
    return %arg0, %c0_i32, %c0_i32_0 : i32, i32, i32
  }
  func.func @transform_2(%arg0: i32) -> (i32, i32, i32) {
    %c0_i32 = arith.constant 0 : i32
    %c0_i32_0 = arith.constant 0 : i32
    %c0_i32_1 = arith.constant 0 : i32
    return %arg0, %c0_i32, %c0_i32_0 : i32, i32, i32
  }
  func.func @transform_3(%arg0: i32) -> (i32, i32, i32) {
    %c0_i32 = arith.constant 0 : i32
    %c0_i32_0 = arith.constant 0 : i32
    %c0_i32_1 = arith.constant 0 : i32
    return %arg0, %c0_i32, %c0_i32_0 : i32, i32, i32
  }
}

</mosaic_0001>

<llo_original>
// kernel: tpu_custom_call.1
$region0: #{tpu_custom_call.1}
  #allocation0 [shape = 'u32[]', space=smem, size = 0x4, offset = 0x4, fixed_abs, tag = 'smem constant byte address 0x4 - core index']
  #allocation1 [shape = 'u32[144,128]{1,0:T(1,128)}', space=vmem, size = 0x12000, scoped, tag = 'internal scratch']
  %s0 = inlined_call_operand.hbm [shape: f32[2,4,128], index: 0, kind: input, shape index: {}]
  %s1 = inlined_call_operand.hbm [shape: f32[2,128,128], index: 1, kind: input, shape index: {}]
  %s2 = inlined_call_operand.vmem [shape: f32[2,1,128], index: 2, kind: input, shape index: {}]
  %s3 = inlined_call_operand.hbm [shape: f32[2,4,128], index: 3, kind: output, shape index: {}]
  %s4 = sld [smem:[#allocation0]]
  $region53: #{tpu_custom_call.1} parent=0
    _
  %s6 = ssub.s32 1, %s4
  %s7 = scalar_select 0, %s6, %s4
  $region1: #{tpu_custom_call.1} parent=0
    #allocation2 [shape = 'u8[4096]{0}', space=vmem, size = 0x1000, scoped, tag = 'input window, operand 0']
    #allocation3 [shape = 's32[2]{0}', space=sflag, size = 0x8, scoped, tag = 'scoped memory for tpu_custom_call.1']
    #allocation4 [shape = 's32[2]{0}', space=sflag, size = 0x8, scoped, tag = 'scoped memory for tpu_custom_call.1']
    #allocation5 [shape = 'u8[131072]{0}', space=vmem, size = 0x20000, scoped, tag = 'input window, operand 1']
    #allocation6 [shape = 's32[2]{0}', space=sflag, size = 0x8, scoped, tag = 'scoped memory for tpu_custom_call.1']
    #allocation7 [shape = 'u8[4096]{0}', space=vmem, size = 0x1000, scoped, tag = 'output window, operand 0']
    %8 = vsyncpa [#allocation3], 0
    %s9 = scalar_lea.sflag [#allocation3], 1
    %10 = vsyncpa %s9, 0
    %11 = vsyncpa [#allocation6], 0
    %s12 = scalar_lea.sflag [#allocation6], 1
    %13 = vsyncpa %s12, 0
    %14 = vsyncpa [#allocation4], 0
    %s15 = scalar_lea.sflag [#allocation4], 1
    %16 = vsyncpa %s15, 0
    loop: start=0, step=1, limit=4
    $region2: #{tpu_custom_call.1} parent=1 // loop_pre_header
      _
    $region3: #{tpu_custom_call.1} parent=1 // loop_header
      %s18 = sphi 0, %s22
      %p19 = scmp.ge.s32.totalorder %s18, 4
      %s28 = sphi 0, %s30
      %s31 = sphi 0, %s28
      %s32 = sphi 0, %s31
      %s48 = sphi 0, %s32
      %s54 = sphi 0, %s56
      %s57 = sphi 0, %s54
      %s58 = sphi 0, %s57
      %s74 = sphi 0, %s58
      %s80 = sphi 0, %s82
      %s83 = sphi 0, %s80
      %s84 = sphi 0, %s83
      %s100 = sphi 0, %s84
      %s106 = sphi 0, %s108
      %s109 = sphi 0, %s106
      %s110 = sphi 0, %s109
      %s126 = sphi 0, %s110
    $region4: #{tpu_custom_call.1} parent=1 // loop_header_branch
      %21 = sbr.rel (%p19) target = $region8
    $region5: #{tpu_custom_call.1} parent=1 // loop_body
      %s23 = ssub.s32 %s18, 1
      %s24 = ssub.s32 %s18, 2
      %s25 = sadd.s32 %s18, 1
      %s26 = ssub.s32 %s18, %s25
      %p27 = scmp.eq.s32.totalorder %s26, 0
      %s29 = sadd.s32 %s28, 1
      %s30 = scalar_select %p27, %s28, %s29
      %p33 = pneg %p27
      %p34 = scmp.eq.s32.totalorder %s18, 1
      %p35 = por %p33, %p34
      %p36 = scmp.ne.s32.totalorder %s28, %s31
      %p37 = scmp.eq.s32.totalorder %s18, 0
      %p38 = por %p36, %p37
      %p39 = scmp.ne.s32.totalorder %s28, %s31
      %p40 = scmp.eq.s32.totalorder %s23, 1
      %p41 = por %p39, %p40
      %p42 = scmp.ne.s32.totalorder %s31, %s32
      %p43 = scmp.eq.s32.totalorder %s23, 0
      %p44 = por %p42, %p43
      %p45 = scmp.ne.s32.totalorder %s31, %s32
      %p46 = scmp.eq.s32.totalorder %s24, 1
      %p47 = por %p45, %p46
      %p49 = scmp.ne.s32.totalorder %s32, %s48
      %p50 = scmp.eq.s32.totalorder %s24, 0
      %p51 = por %p49, %p50
      %s52 = ssub.s32 %s18, %s25
      %p53 = scmp.eq.s32.totalorder %s52, 0
      %s55 = sadd.s32 %s54, 1
      %s56 = scalar_select %p53, %s54, %s55
      %p59 = pneg %p53
      %p60 = scmp.eq.s32.totalorder %s18, 1
      %p61 = por %p59, %p60
      %p62 = scmp.ne.s32.totalorder %s54, %s57
      %p63 = scmp.eq.s32.totalorder %s18, 0
      %p64 = por %p62, %p63
      %p65 = scmp.ne.s32.totalorder %s54, %s57
      %p66 = scmp.eq.s32.totalorder %s23, 1
      %p67 = por %p65, %p66
      %p68 = scmp.ne.s32.totalorder %s57, %s58
      %p69 = scmp.eq.s32.totalorder %s23, 0
      %p70 = por %p68, %p69
      %p71 = scmp.ne.s32.totalorder %s57, %s58
      %p72 = scmp.eq.s32.totalorder %s24, 1
      %p73 = por %p71, %p72
      %p75 = scmp.ne.s32.totalorder %s58, %s74
      %p76 = scmp.eq.s32.totalorder %s24, 0
      %p77 = por %p75, %p76
      %s78 = ssub.s32 %s18, %s25
      %p79 = scmp.eq.s32.totalorder %s78, 0
      %s81 = sadd.s32 %s80, 1
      %s82 = scalar_select %p79, %s80, %s81
      %p85 = pneg %p79
      %p86 = scmp.eq.s32.totalorder %s18, 1
      %p87 = por %p85, %p86
      %p88 = scmp.ne.s32.totalorder %s80, %s83
      %p89 = scmp.eq.s32.totalorder %s18, 0
      %p90 = por %p88, %p89
      %p91 = scmp.ne.s32.totalorder %s80, %s83
      %p92 = scmp.eq.s32.totalorder %s23, 1
      %p93 = por %p91, %p92
      %p94 = scmp.ne.s32.totalorder %s83, %s84
      %p95 = scmp.eq.s32.totalorder %s23, 0
      %p96 = por %p94, %p95
      %p97 = scmp.ne.s32.totalorder %s83, %s84
      %p98 = scmp.eq.s32.totalorder %s24, 1
      %p99 = por %p97, %p98
      %p101 = scmp.ne.s32.totalorder %s84, %s100
      %p102 = scmp.eq.s32.totalorder %s24, 0
      %p103 = por %p101, %p102
      %s104 = ssub.s32 %s18, %s25
      %p105 = scmp.eq.s32.totalorder %s104, 0
      %s107 = sadd.s32 %s106, 1
      %s108 = scalar_select %p105, %s106, %s107
      %p111 = pneg %p105
      %p112 = scmp.eq.s32.totalorder %s18, 1
      %p113 = por %p111, %p112
      %p114 = scmp.ne.s32.totalorder %s106, %s109
      %p115 = scmp.eq.s32.totalorder %s18, 0
      %p116 = por %p114, %p115
      %p117 = scmp.ne.s32.totalorder %s106, %s109
      %p118 = scmp.eq.s32.totalorder %s23, 1
      %p119 = por %p117, %p118
      %p120 = scmp.ne.s32.totalorder %s109, %s110
      %p121 = scmp.eq.s32.totalorder %s23, 0
      %p122 = por %p120, %p121
      %p123 = scmp.ne.s32.totalorder %s109, %s110
      %p124 = scmp.eq.s32.totalorder %s24, 1
      %p125 = por %p123, %p124
      %p127 = scmp.ne.s32.totalorder %s110, %s126
      %p128 = scmp.eq.s32.totalorder %s24, 0
      %p129 = por %p127, %p128
      %p130 = scmp.le.s32.totalorder 1, %s18
      %p131 = scmp.lt.s32.totalorder %s18, 3
      %p132 = pnand %p130, %p131
      %p133 = pneg %p132
      // Predicated region
      $region9: #{tpu_custom_call.1} parent=5 // pred_check
        _
      $region10: #{tpu_custom_call.1} parent=5 // pred_check_branch
        %135 = sbr.rel (%p132) target = $region12
      $region11: #{tpu_custom_call.1} parent=5 // pred_region
        %s136 = ssub.s32 %s18, 1
      $region12: #{tpu_custom_call.1} parent=5 // pred_fallthru
        _
      %p137 = scmp.lt.s32.totalorder %s18, 2
      // Predicated region
      $region13: #{tpu_custom_call.1} parent=5 // pred_check
        %p138 = pneg %p137
      $region14: #{tpu_custom_call.1} parent=5 // pred_check_branch
        %140 = sbr.rel (%p138) target = $region16
      $region15: #{tpu_custom_call.1} parent=5 // pred_region
        // Predicated region
        $region17: #{tpu_custom_call.1} parent=15 // pred_check
          %p141 = pneg %p38
        $region18: #{tpu_custom_call.1} parent=15 // pred_check_branch
          %143 = sbr.rel (%p141) target = $region20
        $region19: #{tpu_custom_call.1} parent=15 // pred_region
          %s144 = sand.u32 %s28, 1
          %s145 = scalar_lea.sflag [#allocation3], %s144
          %s146 = sand.u32 %s28, 1
          %s147 = smul.addr %s146, 4
          %s148 = scalar_lea.vmem [#allocation2], %s147
          %s150 = ssub.s32 64, 64
          %151 = vsyncadd %s145, %s150
          %s152 = smul.addr %s18, 64
          %s153 = scalar_lea.hbm %s0, %s152
          %s155 = sshll.u32 %s148, 4
          %s156 = int_to_ptr.vmem [resolvable:$true] %s155
          %158 = dma.hbm_to_vmem [thread:$0]  %s153, 64, %s156, %s145
        $region20: #{tpu_custom_call.1} parent=15 // pred_fallthru
          _
        // Predicated region
        $region21: #{tpu_custom_call.1} parent=15 // pred_check
          %p159 = pneg %p64
        $region22: #{tpu_custom_call.1} parent=15 // pred_check_branch
          %161 = sbr.rel (%p159) target = $region24
        $region23: #{tpu_custom_call.1} parent=15 // pred_region
          %s162 = sand.u32 %s54, 1
          %s163 = scalar_lea.sflag [#allocation6], %s162
          %s164 = sand.u32 %s54, 1
          %s165 = smul.addr %s164, 128
          %s166 = scalar_lea.vmem [#allocation5], %s165
          %s168 = ssub.s32 2048, 2048
          %169 = vsyncadd %s163, %s168
          %s170 = smul.addr %s18, 16
          %s171 = smul.addr %s170, 128
          %s172 = scalar_lea.hbm %s1, %s171
          %s173 = sshll.u32 %s166, 4
          %s174 = int_to_ptr.vmem [resolvable:$true] %s173
          %179 = dma.hbm_to_vmem [thread:$0]  %s172, 2048, %s174, %s163, 128, 128, 8
        $region24: #{tpu_custom_call.1} parent=15 // pred_fallthru
          _
        // Predicated region
        $region25: #{tpu_custom_call.1} parent=15 // pred_check
          %p180 = pneg %p90
        $region26: #{tpu_custom_call.1} parent=15 // pred_check_branch
          %182 = sbr.rel (%p180) target = $region28
        $region27: #{tpu_custom_call.1} parent=15 // pred_region
          %p183 = scmp.lt.s32.totalorder %s18, 1
          %s184 = scalar_select %p183, %s18, 1
          %s185 = scalar_lea.vmem %s2, %s184
        $region28: #{tpu_custom_call.1} parent=15 // pred_fallthru
          _
      $region16: #{tpu_custom_call.1} parent=5 // pred_fallthru
        _
      %p186 = scmp.le.s32.totalorder 1, %s18
      %p187 = scmp.lt.s32.totalorder %s18, 3
      %p188 = pnand %p186, %p187
      %p189 = pneg %p188
      // Predicated region
      $region29: #{tpu_custom_call.1} parent=5 // pred_check
        _
      $region30: #{tpu_custom_call.1} parent=5 // pred_check_branch
        %191 = sbr.rel (%p188) target = $region32
      $region31: #{tpu_custom_call.1} parent=5 // pred_region
        %s192 = ssub.s32 %s18, 1
        %s193 = sand.u32 %s31, 1
        %s194 = scalar_lea.sflag [#allocation3], %s193
        %s195 = sand.u32 %s31, 1
        %s196 = smul.addr %s195, 4
        %s197 = scalar_lea.vmem [#allocation2], %s196
        // Predicated region
        $region33: #{tpu_custom_call.1} parent=31 // pred_check
          %p198 = pneg %p44
        $region34: #{tpu_custom_call.1} parent=31 // pred_check_branch
          %200 = sbr.rel (%p198) target = $region36
        $region35: #{tpu_custom_call.1} parent=31 // pred_region
          %201 = dma.done %s194, 64
        $region36: #{tpu_custom_call.1} parent=31 // pred_fallthru
          _
        %s202 = sand.u32 %s57, 1
        %s203 = scalar_lea.sflag [#allocation6], %s202
        %s204 = sand.u32 %s57, 1
        %s205 = smul.addr %s204, 128
        %s206 = scalar_lea.vmem [#allocation5], %s205
        // Predicated region
        $region37: #{tpu_custom_call.1} parent=31 // pred_check
          %p207 = pneg %p70
        $region38: #{tpu_custom_call.1} parent=31 // pred_check_branch
          %209 = sbr.rel (%p207) target = $region40
        $region39: #{tpu_custom_call.1} parent=31 // pred_region
          %210 = dma.done %s203, 2048
        $region40: #{tpu_custom_call.1} parent=31 // pred_fallthru
          _
        %s211 = sand.u32 %s31, 1
        %s212 = scalar_lea.sflag [#allocation3], %s211
        %s213 = sand.u32 %s31, 1
        %s214 = smul.addr %s213, 4
        %s215 = scalar_lea.vmem [#allocation2], %s214
        %p216 = pneg %p44
        %p217 = pneg %p41
        %s218 = sand.u32 %s57, 1
        %s219 = scalar_lea.sflag [#allocation6], %s218
        %s220 = sand.u32 %s57, 1
        %s221 = smul.addr %s220, 128
        %s222 = scalar_lea.vmem [#allocation5], %s221
        %p223 = pneg %p70
        %p224 = pneg %p67
        %p225 = scmp.lt.s32.totalorder %s23, 1
        %s226 = scalar_select %p225, %s23, 1
        %s227 = scalar_lea.vmem %s2, %s226
        %p228 = pneg %p96
        %p229 = pneg %p93
        %p230 = pneg %p122
        %p231 = pneg %p119
        %s232 = sand.u32 %s109, 1
        %s233 = scalar_lea.sflag [#allocation4], %s232
        %s234 = sand.u32 %s109, 1
        %s235 = smul.addr %s234, 4
        %s236 = scalar_lea.vmem [#allocation7], %s235
        %p237 = scmp.lt.s32.totalorder %s23, 1
        %s238 = scalar_select %p237, %s23, 1
        %s239 = scalar_lea.vmem %s2, %s238
        %v240 = vld [vmem:[%s197] sm:$0xf]
        %v241 = vld [vmem:[%s206] sm:$0xff]
        %v242 = vld [vmem:[%s206 + $0x8] sm:$0xff]
        %v243 = vld [vmem:[%s206 + $0x10] sm:$0xff]
        %v244 = vld [vmem:[%s206 + $0x18] sm:$0xff]
        %v245 = vld [vmem:[%s206 + $0x20] sm:$0xff]
        %v246 = vld [vmem:[%s206 + $0x28] sm:$0xff]
        %v247 = vld [vmem:[%s206 + $0x30] sm:$0xff]
        %v248 = vld [vmem:[%s206 + $0x38] sm:$0xff]
        %v249 = vld [vmem:[%s206 + $0x40] sm:$0xff]
        %v250 = vld [vmem:[%s206 + $0x48] sm:$0xff]
        %v251 = vld [vmem:[%s206 + $0x50] sm:$0xff]
        %v252 = vld [vmem:[%s206 + $0x58] sm:$0xff]
        %v253 = vld [vmem:[%s206 + $0x60] sm:$0xff]
        %v254 = vld [vmem:[%s206 + $0x68] sm:$0xff]
        %v255 = vld [vmem:[%s206 + $0x70] sm:$0xff]
        %v256 = vld [vmem:[%s206 + $0x78] sm:$0xff]
        %v257 = vld [vmem:[%s239] sm:$0x1]
        %v259 = vlaneseq
        %v260 = vshrl.u32 %v259, 7
        %v261 = vsub.s32 0, %v260
        %v262 = vrot.slane %v257, %v261
        %264 = vmatprep.subr.mxu0 0.0
        %265 = vmatpush1.msra.mxu0 %v256
        %266 = vmatprep.subr.mxu0 0.0
        %267 = vmatpush1.msra.mxu0 %v255
        %268 = vmatprep.subr.mxu0 0.0
        %269 = vmatpush1.msra.mxu0 %v254
        %270 = vmatprep.subr.mxu0 0.0
        %271 = vmatpush1.msra.mxu0 %v253
        %272 = vmatprep.subr.mxu0 0.0
        %273 = vmatpush1.msra.mxu0 %v252
        %274 = vmatprep.subr.mxu0 0.0
        %275 = vmatpush1.msra.mxu0 %v251
        %276 = vmatprep.subr.mxu0 0.0
        %277 = vmatpush1.msra.mxu0 %v250
        %278 = vmatprep.subr.mxu0 0.0
        %279 = vmatpush1.msra.mxu0 %v249
        %280 = vmatprep.subr.mxu0 0.0
        %281 = vmatpush1.msra.mxu0 %v248
        %282 = vmatprep.subr.mxu0 0.0
        %283 = vmatpush1.msra.mxu0 %v247
        %284 = vmatprep.subr.mxu0 0.0
        %285 = vmatpush1.msra.mxu0 %v246
        %286 = vmatprep.subr.mxu0 0.0
        %287 = vmatpush1.msra.mxu0 %v245
        %288 = vmatprep.subr.mxu0 0.0
        %289 = vmatpush1.msra.mxu0 %v244
        %290 = vmatprep.subr.mxu0 0.0
        %291 = vmatpush1.msra.mxu0 %v243
        %292 = vmatprep.subr.mxu0 0.0
        %293 = vmatpush1.msra.mxu0 %v242
        %294 = vmatprep.subr.mxu0 0.0
        %295 = vmatpush1.msra.mxu0 %v241
        %296 = vmatprep.subr.mxu0 0.0
        %297 = vmatpush2.msra.mxu0 0.0
        %298 = vmatprep.subr.mxu0 0.0
        %299 = vmatpush2.msra.mxu0 0.0
        %300 = vmatprep.subr.mxu0 0.0
        %301 = vmatpush2.msra.mxu0 0.0
        %302 = vmatprep.subr.mxu0 0.0
        %303 = vmatpush2.msra.mxu0 0.0
        %304 = vmatprep.subr.mxu0 0.0
        %305 = vmatpush2.msra.mxu0 0.0
        %306 = vmatprep.subr.mxu0 0.0
        %307 = vmatpush2.msra.mxu0 0.0
        %308 = vmatprep.subr.mxu0 0.0
        %309 = vmatpush2.msra.mxu0 0.0
        %310 = vmatprep.subr.mxu0 0.0
        %311 = vmatpush2.msra.mxu0 0.0
        %312 = vmatprep.subr.mxu0 0.0
        %313 = vmatpush2.msra.mxu0 0.0
        %314 = vmatprep.subr.mxu0 0.0
        %315 = vmatpush2.msra.mxu0 0.0
        %316 = vmatprep.subr.mxu0 0.0
        %317 = vmatpush2.msra.mxu0 0.0
        %318 = vmatprep.subr.mxu0 0.0
        %319 = vmatpush2.msra.mxu0 0.0
        %320 = vmatprep.subr.mxu0 0.0
        %321 = vmatpush2.msra.mxu0 0.0
        %322 = vmatprep.subr.mxu0 0.0
        %323 = vmatpush2.msra.mxu0 0.0
        %324 = vmatprep.subr.mxu0 0.0
        %325 = vmatpush2.msra.mxu0 0.0
        %326 = vmatprep.subr.mxu0 0.0
        %327 = vmatpush2.msra.mxu0 0.0
        %328 = vmatprep.mubr.f32.mxu0 0.0
        %329 = vmatmul.mubr.f32.gmra.mxu0 %v240
        %v330 = vpop.f32.mrf.mxu0
        %v331 = vadd.f32 %v262, %v330
        %v332 = vpop.f32.mrf.mxu0
        %333 = vdwg.mxu0
        %v334 = vmul.f32 %v331, %v331
        %vm335 = vcmask 1043456
        %v336 = vsel %vm335, %v334, 0.0
        %337 = vadd.xlane.f32.xlu0 %v336
        %v338 = vpop.xlane.xlu0 %337
        %v339 = vrsqrt.pop %v338
        %v340 = vmul.f32 %v331, %v339
        %341 = vst [vmem:[%s236] sm:$0xf] %v340
        %s342 = sand.u32 %s109, 1
        %s343 = scalar_lea.sflag [#allocation4], %s342
        %s344 = sand.u32 %s109, 1
        %s345 = smul.addr %s344, 4
        %s346 = scalar_lea.vmem [#allocation7], %s345
        // Predicated region
        $region41: #{tpu_custom_call.1} parent=31 // pred_check
          %p347 = pneg %p119
        $region42: #{tpu_custom_call.1} parent=31 // pred_check_branch
          %349 = sbr.rel (%p347) target = $region44
        $region43: #{tpu_custom_call.1} parent=31 // pred_region
          %s351 = ssub.s32 64, 64
          %352 = vsyncadd %s343, %s351
          %s353 = smul.addr %s23, 64
          %s354 = scalar_lea.hbm %s3, %s353
          %s356 = sshll.u32 %s346, 4
          %s357 = int_to_ptr.vmem [resolvable:$true] %s356
          %359 = dma.vmem_to_hbm [thread:$0]  %s357, 64, %s354, %s343
        $region44: #{tpu_custom_call.1} parent=31 // pred_fallthru
          _
      $region32: #{tpu_custom_call.1} parent=5 // pred_fallthru
        _
      %p360 = scmp.le.s32.totalorder 2, %s18
      // Predicated region
      $region45: #{tpu_custom_call.1} parent=5 // pred_check
        %p361 = pneg %p360
      $region46: #{tpu_custom_call.1} parent=5 // pred_check_branch
        %363 = sbr.rel (%p361) target = $region48
      $region47: #{tpu_custom_call.1} parent=5 // pred_region
        %s364 = ssub.s32 %s18, 2
        // Predicated region
        $region49: #{tpu_custom_call.1} parent=47 // pred_check
          %p365 = pneg %p125
        $region50: #{tpu_custom_call.1} parent=47 // pred_check_branch
          %367 = sbr.rel (%p365) target = $region52
        $region51: #{tpu_custom_call.1} parent=47 // pred_region
          %s368 = sand.u32 %s110, 1
          %s369 = scalar_lea.sflag [#allocation4], %s368
          %s370 = sand.u32 %s110, 1
          %s371 = smul.addr %s370, 4
          %s372 = scalar_lea.vmem [#allocation7], %s371
          %373 = dma.done %s369, 64
        $region52: #{tpu_custom_call.1} parent=47 // pred_fallthru
          _
      $region48: #{tpu_custom_call.1} parent=5 // pred_fallthru
        _
    $region6: #{tpu_custom_call.1} parent=1 // loop_footer
      %s22 = sadd.s32 1, %s18
    $region7: #{tpu_custom_call.1} parent=1 // loop_footer_branch
      %17 = sbr.rel target = $region3
    $region8: #{tpu_custom_call.1} parent=1 // loop_exit
      _
    %374 = vsyncpa [#allocation3], 1
    %s375 = scalar_lea.sflag [#allocation3], 1
    %376 = vsyncpa %s375, 1
    %377 = vsyncpa [#allocation6], 1
    %s378 = scalar_lea.sflag [#allocation6], 1
    %379 = vsyncpa %s378, 1
    %380 = vsyncpa [#allocation4], 1
    %s381 = scalar_lea.sflag [#allocation4], 1
    %382 = vsyncpa %s381, 1

</llo_original>
